<compile_context>
chip_gen: v6e
topology: v6e:2x2x1
jax: 0.10.0
libtpu: 0.0.40
codegen_flags: <defaults>
</compile_context>

<pallas_src>
import functools

import jax
import jax.numpy as jnp
from jax.experimental import pallas as pl
from jax.experimental.pallas import tpu as pltpu

LANES = 128
EPS = 1e-7
_MIB = 1 << 20


def _device_plan():
    """Per-TPU-generation plan: (pipelined-input VMEM byte budget, core splits,
    leading-grid-axis dimension semantic)."""
    try:
        kind = jax.devices()[0].device_kind.lower()
    except Exception:
        kind = ""
    if "v6" in kind:                       # v6e: 1 TC, 32 MiB scoped-VMEM default
        return 16 * _MIB, 1, "arbitrary"
    if "7" in kind:                        # v7x: 2 TCs/chip, 64 MiB VMEM (32 MiB scoped)
        return 16 * _MIB, 2, getattr(pltpu, "CORE_PARALLEL", "parallel")
    if "v5p" in kind or "v4" in kind:      # megacore chips: 2 TCs behind one device
        return 16 * _MIB, 2, "parallel"
    if "v5" in kind:                       # v5e / v5 lite: 16 MiB scoped-VMEM default
        return 8 * _MIB, 1, "arbitrary"
    return 8 * _MIB, 1, "arbitrary"        # unknown: conservative


def _accumulate(o_raw, t_raw, acc_ref, mask=None):
    """Add this block's partial sums [loglik, o*t, o+t] (per-lane) into acc_ref."""
    o = o_raw.astype(jnp.float32)
    t = t_raw.astype(jnp.float32)
    if mask is not None:
        # Replace invalid elements with finite, log-safe values BEFORE the clip/log
        # (out-of-bounds tail data is unspecified and could be NaN/Inf).
        o = jnp.where(mask, o, 0.5)
        t = jnp.where(mask, t, 0.0)

    # torch.clamp(out, 1e-7, 1 - 1e-7)
    o = jnp.clip(o, EPS, 1.0 - EPS)
    log_o = jnp.log(o)
    log_1mo = jnp.log(1.0 - o)
    # t*log(o) + (1-t)*log(1-o)  ==  t*(log(o) - log(1-o)) + log(1-o)   (= -BCE)
    ll = t * (log_o - log_1mo) + log_1mo
    inter = o * t                         # already 0 on invalid elements (t == 0)

    if mask is not None:
        m = mask.astype(jnp.float32)
        ll = ll * m
        osum = o * m + t                  # t already zeroed on invalid elements
    else:
        osum = o + t

    # Sublane-only reductions -> pad to a full (8, 128) vreg for unmasked stores;
    # the cross-lane reduce happens in JAX.
    part = jnp.concatenate(
        [
            jnp.sum(ll, axis=0, keepdims=True),
            jnp.sum(inter, axis=0, keepdims=True),
            jnp.sum(osum, axis=0, keepdims=True),
            jnp.zeros((5, LANES), jnp.float32),
        ],
        axis=0,
    )
    acc_ref[...] += part


def _loss_sums_kernel(o_ref, t_ref, acc_ref, *, n, block_rows, blocks_per_split):
    c = pl.program_id(0)          # core-split index
    i = pl.program_id(1)          # block index within the split ("arbitrary")

    # Zero the per-split resident accumulator on its first reduction step.
    @pl.when(i == 0)
    def _():
        acc_ref[...] = jnp.zeros_like(acc_ref)

    block_elems = block_rows * LANES
    v = c * blocks_per_split + i              # virtual (global) block index, UNclamped
    start = v * block_elems                   # first flat element of this block
    full = (start + block_elems) <= n         # block entirely inside the valid range

    @pl.when(full)
    def _():
        _accumulate(o_ref[...], t_ref[...], acc_ref)

    @pl.when(jnp.logical_not(full))
    def _():
        # Only the tail (or clamped duplicate) blocks pay the iota/compare/select.
        # For a duplicate block, start >= n so the mask is all-False -> zero add.
        row = jax.lax.broadcasted_iota(jnp.int32, (block_rows, LANES), 0)
        col = jax.lax.broadcasted_iota(jnp.int32, (block_rows, LANES), 1)
        idx = start + row * LANES + col
        _accumulate(o_ref[...], t_ref[...], acc_ref, mask=idx < n)


@functools.partial(jax.jit, static_argnames=("_max_block_rows", "_num_splits"))
def weighted_bce_dice_loss(out, target, wb=1.0, wd=1.0,
                           *, _max_block_rows=None, _num_splits=None):
    """Pallas implementation of WeightedBCEDiceLoss.forward(out, target)."""
    n = out.size
    flat_o = out.reshape(-1)          # keep input dtype; cast to f32 in-kernel
    flat_t = target.reshape(-1)

    rows = -(-n // LANES)             # ceil-div
    pad = rows * LANES - n
    if pad:                           # only for non-lane-aligned sizes (rare)
        flat_o = jnp.pad(flat_o, (0, pad))
        flat_t = jnp.pad(flat_t, (0, pad))
    o2 = flat_o.reshape(rows, LANES)
    t2 = flat_t.reshape(rows, LANES)

    # Generation + dtype aware tile sizing: fill the double-buffered input-window
    # byte budget, keep block_rows a multiple of 8 (or use the full extent).
    budget_bytes, plan_splits, lead_sem = _device_plan()
    bytes_per_row = LANES * (jnp.dtype(out.dtype).itemsize
                             + jnp.dtype(target.dtype).itemsize)
    cap = max(8, (budget_bytes // (2 * bytes_per_row)) // 8 * 8)
    if _max_block_rows is not None:                 # test-only override
        cap = max(8, (_max_block_rows // 8) * 8)
    block_rows = rows if rows <= cap else cap

    total_blocks = -(-rows // block_rows)
    num_splits = plan_splits if total_blocks >= plan_splits else 1
    if _num_splits is not None:                     # test-only override
        num_splits = _num_splits if total_blocks >= _num_splits else 1
    if num_splits == 1:
        lead_sem = "arbitrary"
    blocks_per_split = -(-total_blocks // num_splits)

    def in_map(c, i):
        v = c * blocks_per_split + i
        # Clamp so a virtual block past the end re-reads the last real block; the
        # in-kernel index mask (idx < n) zeroes its contribution.
        return (jnp.minimum(v, total_blocks - 1), 0)

    kernel = functools.partial(
        _loss_sums_kernel,
        n=n,
        block_rows=block_rows,
        blocks_per_split=blocks_per_split,
    )

    sums = pl.pallas_call(
        kernel,
        out_shape=jax.ShapeDtypeStruct((num_splits, 8, LANES), jnp.float32),
        grid_spec=pltpu.PrefetchScalarGridSpec(
            num_scalar_prefetch=0,
            grid=(num_splits, blocks_per_split),
            in_specs=[
                pl.BlockSpec((block_rows, LANES), in_map),
                pl.BlockSpec((block_rows, LANES), in_map),
            ],
            out_specs=pl.BlockSpec((None, 8, LANES), lambda c, i: (c, 0, 0)),
        ),
        compiler_params=pltpu.CompilerParams(
            dimension_semantics=(lead_sem, "arbitrary"),
        ),
    )(o2, t2)

    totals = jnp.sum(sums, axis=(0, 2))        # (8,) cross-split + cross-lane reduce
    bce = -totals[0] / jnp.float32(n)          # F.binary_cross_entropy mean reduction
    smooth = jnp.float32(1e-5)
    dice = (2.0 * totals[1] + smooth) / (totals[2] + smooth)
    return wb * bce + wd * (1.0 - dice)


def _reference_loss(out, target, wb=1.0, wd=1.0):
    out = jnp.clip(out.astype(jnp.float32), 1e-7, 1.0 - 1e-7)
    target = target.astype(jnp.float32)
    bce = jnp.mean(-(target * jnp.log(out) + (1.0 - target) * jnp.log(1.0 - out)))
    smooth = 1e-5
    inter = jnp.sum(out * target)
    dice = (2.0 * inter + smooth) / (jnp.sum(out) + jnp.sum(target) + smooth)
    return wb * bce + wd * (1.0 - dice)


if __name__ == "__main__":
    key = jax.random.PRNGKey(0)
    k1, k2, k3, k4, k5, k6, k7, k8 = jax.random.split(key, 8)

    # Case 1: canonical small NCHW, lane-aligned (no padding, fast path only).
    out1 = jax.nn.sigmoid(jax.random.normal(k1, (2, 4, 16, 16), dtype=jnp.float32))
    tgt1 = (jax.random.uniform(k2, (2, 4, 16, 16)) > 0.5).astype(jnp.float32)

    # Case 2: ragged size (n = 462) -> exercises the in-kernel tail mask.
    out2 = jax.nn.sigmoid(jax.random.normal(k3, (2, 3, 7, 11), dtype=jnp.float32))
    tgt2 = (jax.random.uniform(k4, (2, 3, 7, 11)) > 0.5).astype(jnp.float32)

    # Case 3: forced small tiles + 2-way split with an even block count
    # (multi-step accumulation, no duplicate block).
    out3 = jax.nn.sigmoid(jax.random.normal(k5, (2, 4, 64, 64), dtype=jnp.float32))
    tgt3 = (jax.random.uniform(k6, (2, 4, 64, 64)) > 0.5).astype(jnp.float32)

    # Case 4: forced small tiles + 2-way split with an odd block count
    # (exercises the clamped duplicate virtual block, masked to zero).
    out4 = jax.nn.sigmoid(jax.random.normal(k7, (3, 4, 32, 64), dtype=jnp.float32))
    tgt4 = (jax.random.uniform(k8, (3, 4, 32, 64)) > 0.5).astype(jnp.bfloat16)

    cases = [
        (out1, tgt1, 1.0, 1.0, {}),
        (out1, tgt1, 0.7, 1.3, {}),
        (out2, tgt2, 1.0, 1.0, {}),
        (out3, tgt3, 1.0, 1.0, {"_max_block_rows": 64, "_num_splits": 2}),
        (out4, tgt4, 0.5, 2.0, {"_max_block_rows": 64, "_num_splits": 2}),
    ]
    for o, t, wb, wd, kw in cases:
        got = jax.block_until_ready(weighted_bce_dice_loss(o, t, wb, wd, **kw))
        want = _reference_loss(o, t, wb, wd)
        assert jnp.allclose(got, want, rtol=1e-4, atol=1e-6), (o.shape, got, want)

    print("KERNEL_OK")
</pallas_src>

<mosaic_0001>
module attributes {stable_mosaic.version = 11 : i64} {
  func.func @_loss_sums_kernel(%arg0: i32, %arg1: i32, %arg2: memref<16x128xf32, #tpu.memory_space<vmem>>, %arg3: memref<16x128xf32, #tpu.memory_space<vmem>>, %arg4: memref<1x8x128xf32, #tpu.memory_space<vmem>>) attributes {dimension_semantics = [#tpu.dimension_semantics<arbitrary>, #tpu.dimension_semantics<arbitrary>], iteration_bounds = array<i64: 1, 1>, scalar_prefetch = 0 : i64, scratch_operands = 0 : i64, tpu.core_type = #tpu.core_type<tc>, window_params = [{transform_indices = @transform_0, window_bounds = array<i64: 16, 128>}, {transform_indices = @transform_1, window_bounds = array<i64: 16, 128>}, {transform_indices = @transform_2, window_bounds = array<i64: 1, 8, 128>}]} {
    %c0_i32 = arith.constant 0 : i32
    %0 = arith.cmpi eq, %arg1, %c0_i32 : i32
    %1 = arith.extui %0 : i1 to i32
    %c0_i32_0 = arith.constant 0 : i32
    %2 = arith.cmpi ne, %1, %c0_i32_0 : i32
    scf.if %2 {
      %cst = arith.constant 0.000000e+00 : f32
      %13 = vector.broadcast %cst : f32 to vector<8x128xf32>
      %c0 = arith.constant 0 : index
      %c0_5 = arith.constant 0 : index
      %c0_6 = arith.constant 0 : index
      %14 = vector.load %arg4[%c0, %c0_5, %c0_6] : memref<1x8x128xf32, #tpu.memory_space<vmem>>, vector<1x8x128xf32>
      %15 = vector.shape_cast %14 : vector<1x8x128xf32> to vector<8x128xf32>
      %16 = vector.shape_cast %13 : vector<8x128xf32> to vector<1x8x128xf32>
      tpu.vector_store %arg4[%c0, %c0_5, %c0_6], %16 {strides = array<i32>} : memref<1x8x128xf32, #tpu.memory_space<vmem>>, vector<1x8x128xf32>,
    } else {
    }
    %c1_i32 = arith.constant 1 : i32
    %3 = arith.muli %arg0, %c1_i32 : i32
    %4 = arith.addi %3, %arg1 : i32
    %c2048_i32 = arith.constant 2048 : i32
    %5 = arith.muli %4, %c2048_i32 : i32
    %c2048_i32_1 = arith.constant 2048 : i32
    %6 = arith.addi %5, %c2048_i32_1 : i32
    %c2048_i32_2 = arith.constant 2048 : i32
    %7 = arith.cmpi sle, %6, %c2048_i32_2 : i32
    %8 = arith.extui %7 : i1 to i32
    %c0_i32_3 = arith.constant 0 : i32
    %9 = arith.cmpi ne, %8, %c0_i32_3 : i32
    scf.if %9 {
      %c0 = arith.constant 0 : index
      %c0_5 = arith.constant 0 : index
      %13 = vector.load %arg2[%c0, %c0_5] : memref<16x128xf32, #tpu.memory_space<vmem>>, vector<16x128xf32>
      %c0_6 = arith.constant 0 : index
      %c0_7 = arith.constant 0 : index
      %14 = vector.load %arg3[%c0_6, %c0_7] : memref<16x128xf32, #tpu.memory_space<vmem>>, vector<16x128xf32>
      %cst = arith.constant 1.000000e-07 : f32
      %cst_8 = arith.constant 0.99999988 : f32
      %15 = vector.broadcast %cst : f32 to vector<16x128xf32>
      %16 = arith.maximumf %15, %13 : vector<16x128xf32>
      %17 = vector.broadcast %cst_8 : f32 to vector<16x128xf32>
      %18 = arith.minimumf %17, %16 : vector<16x128xf32>
      %19 = math.log %18 : vector<16x128xf32>
      %cst_9 = arith.constant 1.000000e+00 : f32
      %20 = vector.broadcast %cst_9 : f32 to vector<16x128xf32>
      %21 = arith.subf %20, %18 : vector<16x128xf32>
      %22 = math.log %21 : vector<16x128xf32>
      %23 = arith.subf %19, %22 : vector<16x128xf32>
      %24 = arith.mulf %14, %23 : vector<16x128xf32>
      %25 = arith.addf %24, %22 : vector<16x128xf32>
      %26 = arith.mulf %18, %14 : vector<16x128xf32>
      %27 = arith.addf %18, %14 : vector<16x128xf32>
      %cst_10 = arith.constant dense<0.000000e+00> : vector<128xf32>
      %28 = vector.multi_reduction <add>, %25, %cst_10 [0] : vector<16x128xf32> to vector<128xf32>
      %29 = vector.shape_cast %28 : vector<128xf32> to vector<1x128xf32>
      %cst_11 = arith.constant dense<0.000000e+00> : vector<128xf32>
      %30 = vector.multi_reduction <add>, %26, %cst_11 [0] : vector<16x128xf32> to vector<128xf32>
      %31 = vector.shape_cast %30 : vector<128xf32> to vector<1x128xf32>
      %cst_12 = arith.constant dense<0.000000e+00> : vector<128xf32>
      %32 = vector.multi_reduction <add>, %27, %cst_12 [0] : vector<16x128xf32> to vector<128xf32>
      %33 = vector.shape_cast %32 : vector<128xf32> to vector<1x128xf32>
      %cst_13 = arith.constant 0.000000e+00 : f32
      %34 = vector.broadcast %cst_13 : f32 to vector<5x128xf32>
      %35 = tpu.concatenate %29, %31, %33, %34 in 0 : vector<1x128xf32>, vector<1x128xf32>, vector<1x128xf32>, vector<5x128xf32> -> vector<8x128xf32>
      %c0_14 = arith.constant 0 : index
      %c0_15 = arith.constant 0 : index
      %c0_16 = arith.constant 0 : index
      %36 = vector.load %arg4[%c0_14, %c0_15, %c0_16] : memref<1x8x128xf32, #tpu.memory_space<vmem>>, vector<1x8x128xf32>
      %37 = vector.shape_cast %36 : vector<1x8x128xf32> to vector<8x128xf32>
      %38 = arith.addf %37, %35 : vector<8x128xf32>
      %c0_17 = arith.constant 0 : index
      %c0_18 = arith.constant 0 : index
      %c0_19 = arith.constant 0 : index
      %39 = vector.load %arg4[%c0_17, %c0_18, %c0_19] : memref<1x8x128xf32, #tpu.memory_space<vmem>>, vector<1x8x128xf32>
      %40 = vector.shape_cast %39 : vector<1x8x128xf32> to vector<8x128xf32>
      %41 = vector.shape_cast %38 : vector<8x128xf32> to vector<1x8x128xf32>
      tpu.vector_store %arg4[%c0_17, %c0_18, %c0_19], %41 {strides = array<i32>} : memref<1x8x128xf32, #tpu.memory_space<vmem>>, vector<1x8x128xf32>,
    } else {
    }
    %true = arith.constant true
    %10 = arith.xori %7, %true : i1
    %11 = arith.extui %10 : i1 to i32
    %c0_i32_4 = arith.constant 0 : i32
    %12 = arith.cmpi ne, %11, %c0_i32_4 : i32
    scf.if %12 {
      %13 = tpu.iota {dimensions = array<i32: 0>} : vector<16x128xi32>
      %14 = tpu.iota {dimensions = array<i32: 1>} : vector<16x128xi32>
      %c128_i32 = arith.constant 128 : i32
      %15 = vector.broadcast %c128_i32 : i32 to vector<16x128xi32>
      %16 = arith.muli %13, %15 : vector<16x128xi32>
      %17 = vector.broadcast %5 : i32 to vector<16x128xi32>
      %18 = arith.addi %17, %16 : vector<16x128xi32>
      %19 = arith.addi %18, %14 : vector<16x128xi32>
      %c0 = arith.constant 0 : index
      %c0_5 = arith.constant 0 : index
      %20 = vector.load %arg2[%c0, %c0_5] : memref<16x128xf32, #tpu.memory_space<vmem>>, vector<16x128xf32>
      %c0_6 = arith.constant 0 : index
      %c0_7 = arith.constant 0 : index
      %21 = vector.load %arg3[%c0_6, %c0_7] : memref<16x128xf32, #tpu.memory_space<vmem>>, vector<16x128xf32>
      %c2048_i32_8 = arith.constant 2048 : i32
      %22 = vector.broadcast %c2048_i32_8 : i32 to vector<16x128xi32>
      %23 = arith.cmpi slt, %19, %22 : vector<16x128xi32>
      %cst = arith.constant 5.000000e-01 : f32
      %24 = vector.broadcast %cst : f32 to vector<16x128xf32>
      %25 = arith.select %23, %20, %24 : vector<16x128xi1>, vector<16x128xf32>
      %cst_9 = arith.constant 0.000000e+00 : f32
      %26 = vector.broadcast %cst_9 : f32 to vector<16x128xf32>
      %27 = arith.select %23, %21, %26 : vector<16x128xi1>, vector<16x128xf32>
      %cst_10 = arith.constant 1.000000e-07 : f32
      %cst_11 = arith.constant 0.99999988 : f32
      %28 = vector.broadcast %cst_10 : f32 to vector<16x128xf32>
      %29 = arith.maximumf %28, %25 : vector<16x128xf32>
      %30 = vector.broadcast %cst_11 : f32 to vector<16x128xf32>
      %31 = arith.minimumf %30, %29 : vector<16x128xf32>
      %32 = math.log %31 : vector<16x128xf32>
      %cst_12 = arith.constant 1.000000e+00 : f32
      %33 = vector.broadcast %cst_12 : f32 to vector<16x128xf32>
      %34 = arith.subf %33, %31 : vector<16x128xf32>
      %35 = math.log %34 : vector<16x128xf32>
      %36 = arith.subf %32, %35 : vector<16x128xf32>
      %37 = arith.mulf %27, %36 : vector<16x128xf32>
      %38 = arith.addf %37, %35 : vector<16x128xf32>
      %39 = arith.mulf %31, %27 : vector<16x128xf32>
      %40 = arith.extui %23 : vector<16x128xi1> to vector<16x128xi32>
      %41 = arith.sitofp %40 : vector<16x128xi32> to vector<16x128xf32>
      %42 = arith.mulf %38, %41 : vector<16x128xf32>
      %43 = arith.mulf %31, %41 : vector<16x128xf32>
      %44 = arith.addf %43, %27 : vector<16x128xf32>
      %cst_13 = arith.constant dense<0.000000e+00> : vector<128xf32>
      %45 = vector.multi_reduction <add>, %42, %cst_13 [0] : vector<16x128xf32> to vector<128xf32>
      %46 = vector.shape_cast %45 : vector<128xf32> to vector<1x128xf32>
      %cst_14 = arith.constant dense<0.000000e+00> : vector<128xf32>
      %47 = vector.multi_reduction <add>, %39, %cst_14 [0] : vector<16x128xf32> to vector<128xf32>
      %48 = vector.shape_cast %47 : vector<128xf32> to vector<1x128xf32>
      %cst_15 = arith.constant dense<0.000000e+00> : vector<128xf32>
      %49 = vector.multi_reduction <add>, %44, %cst_15 [0] : vector<16x128xf32> to vector<128xf32>
      %50 = vector.shape_cast %49 : vector<128xf32> to vector<1x128xf32>
      %cst_16 = arith.constant 0.000000e+00 : f32
      %51 = vector.broadcast %cst_16 : f32 to vector<5x128xf32>
      %52 = tpu.concatenate %46, %48, %50, %51 in 0 : vector<1x128xf32>, vector<1x128xf32>, vector<1x128xf32>, vector<5x128xf32> -> vector<8x128xf32>
      %c0_17 = arith.constant 0 : index
      %c0_18 = arith.constant 0 : index
      %c0_19 = arith.constant 0 : index
      %53 = vector.load %arg4[%c0_17, %c0_18, %c0_19] : memref<1x8x128xf32, #tpu.memory_space<vmem>>, vector<1x8x128xf32>
      %54 = vector.shape_cast %53 : vector<1x8x128xf32> to vector<8x128xf32>
      %55 = arith.addf %54, %52 : vector<8x128xf32>
      %c0_20 = arith.constant 0 : index
      %c0_21 = arith.constant 0 : index
      %c0_22 = arith.constant 0 : index
      %56 = vector.load %arg4[%c0_20, %c0_21, %c0_22] : memref<1x8x128xf32, #tpu.memory_space<vmem>>, vector<1x8x128xf32>
      %57 = vector.shape_cast %56 : vector<1x8x128xf32> to vector<8x128xf32>
      %58 = vector.shape_cast %55 : vector<8x128xf32> to vector<1x8x128xf32>
      tpu.vector_store %arg4[%c0_20, %c0_21, %c0_22], %58 {strides = array<i32>} : memref<1x8x128xf32, #tpu.memory_space<vmem>>, vector<1x8x128xf32>,
    } else {
    }
    return
  }
  func.func @transform_0(%arg0: i32, %arg1: i32) -> (i32, i32) {
    %c1_i32 = arith.constant 1 : i32
    %0 = arith.muli %arg0, %c1_i32 : i32
    %1 = arith.addi %0, %arg1 : i32
    %c0_i32 = arith.constant 0 : i32
    %2 = arith.minsi %1, %c0_i32 : i32
    %c0_i32_0 = arith.constant 0 : i32
    %c0_i32_1 = arith.constant 0 : i32
    return %2, %c0_i32_0 : i32, i32
  }
  func.func @transform_1(%arg0: i32, %arg1: i32) -> (i32, i32) {
    %c1_i32 = arith.constant 1 : i32
    %0 = arith.muli %arg0, %c1_i32 : i32
    %1 = arith.addi %0, %arg1 : i32
    %c0_i32 = arith.constant 0 : i32
    %2 = arith.minsi %1, %c0_i32 : i32
    %c0_i32_0 = arith.constant 0 : i32
    %c0_i32_1 = arith.constant 0 : i32
    return %2, %c0_i32_0 : i32, i32
  }
  func.func @transform_2(%arg0: i32, %arg1: i32) -> (i32, i32, i32) {
    %c0_i32 = arith.constant 0 : i32
    %c0_i32_0 = arith.constant 0 : i32
    %c0_i32_1 = arith.constant 0 : i32
    return %arg0, %c0_i32, %c0_i32_0 : i32, i32, i32
  }
}

</mosaic_0001>

<llo_original>
// kernel: weighted_bce_dice_loss.1
$region0: #{weighted_bce_dice_loss.1}
  #allocation0 [shape = 'u32[]', space=smem, size = 0x4, offset = 0x4, fixed_abs, tag = 'smem constant byte address 0x4 - core index']
  #allocation1 [shape = 'u32[144,128]{1,0:T(1,128)}', space=vmem, size = 0x12000, scoped, tag = 'internal scratch']
  %s0 = inlined_call_operand.vmem [shape: f32[16,128], index: 0, kind: input, shape index: {}]
  %s1 = inlined_call_operand.vmem [shape: f32[16,128], index: 1, kind: input, shape index: {}]
  %s2 = inlined_call_operand.vmem [shape: f32[1,8,128], index: 2, kind: output, shape index: {}]
  %s3 = sld [smem:[#allocation0]]
  $region30: #{weighted_bce_dice_loss.1} parent=0
    _
  %s5 = ssub.s32 1, %s3
  %s6 = scalar_select 0, %s5, %s3
  // Predicated region
  $region2: #{weighted_bce_dice_loss.1} parent=0 // pred_check
    _
  $region3: #{weighted_bce_dice_loss.1} parent=0 // pred_check_branch
    %8 = sbr.rel (0) target = $region5
  $region4: #{weighted_bce_dice_loss.1} parent=0 // pred_region
    %s9 = sadd.s32 0, 0
    %p10 = scmp.lt.s32.totalorder %s9, 0
    %s11 = scalar_select %p10, %s9, 0
    %s12 = smul.u32 2, %s11
    %p13 = scmp.lt.s32.totalorder %s12, 1
    %s14 = scalar_select %p13, %s12, 1
    %s15 = smul.addr %s14, 8
    %s16 = scalar_lea.vmem %s0, %s15
    %s17 = sadd.s32 0, 0
    %p18 = scmp.lt.s32.totalorder %s17, 0
    %s19 = scalar_select %p18, %s17, 0
    %s20 = smul.u32 2, %s19
  $region5: #{weighted_bce_dice_loss.1} parent=0 // pred_fallthru
    _
  // Predicated region
  $region6: #{weighted_bce_dice_loss.1} parent=0 // pred_check
    _
  $region7: #{weighted_bce_dice_loss.1} parent=0 // pred_check_branch
    %22 = sbr.rel (0) target = $region9
  $region8: #{weighted_bce_dice_loss.1} parent=0 // pred_region
    %s23 = sadd.s32 0, 0
    %p24 = scmp.lt.s32.totalorder %s23, 0
    %s25 = scalar_select %p24, %s23, 0
    %s26 = smul.u32 2, %s25
    %p27 = scmp.lt.s32.totalorder %s26, 1
    %s28 = scalar_select %p27, %s26, 1
    %s29 = smul.addr %s28, 8
    %s30 = scalar_lea.vmem %s1, %s29
    %s31 = sadd.s32 0, 0
    %p32 = scmp.lt.s32.totalorder %s31, 0
    %s33 = scalar_select %p32, %s31, 0
    %s34 = smul.u32 2, %s33
  $region9: #{weighted_bce_dice_loss.1} parent=0 // pred_fallthru
    _
  %s35 = sadd.s32 0, 0
  %p36 = scmp.lt.s32.totalorder %s35, 0
  %s37 = scalar_select %p36, %s35, 0
  %s38 = smul.u32 2, %s37
  %p39 = scmp.lt.s32.totalorder %s38, 1
  %s40 = scalar_select %p39, %s38, 1
  %s41 = smul.addr %s40, 8
  %s42 = scalar_lea.vmem %s0, %s41
  %s43 = sadd.s32 0, 0
  %p44 = scmp.lt.s32.totalorder %s43, 0
  %s45 = scalar_select %p44, %s43, 0
  %s46 = smul.u32 2, %s45
  %p47 = scmp.lt.s32.totalorder %s46, 1
  %s48 = scalar_select %p47, %s46, 1
  %s49 = smul.addr %s48, 8
  %s50 = scalar_lea.vmem %s1, %s49
  %s51 = sadd.s32 0, 0
  %p52 = scmp.lt.s32.totalorder %s51, 0
  %s53 = scalar_select %p52, %s51, 0
  %s54 = smul.u32 2, %s53
  %p55 = scmp.lt.s32.totalorder %s54, 1
  %s56 = scalar_select %p55, %s54, 1
  %s57 = smul.addr %s56, 8
  %s58 = scalar_lea.vmem %s0, %s57
  %s59 = sadd.s32 0, 0
  %p60 = scmp.lt.s32.totalorder %s59, 0
  %s61 = scalar_select %p60, %s59, 0
  %s62 = smul.u32 2, %s61
  %s63 = sadd.s32 0, 0
  %p64 = scmp.lt.s32.totalorder %s63, 0
  %s65 = scalar_select %p64, %s63, 0
  %s66 = smul.u32 2, %s65
  %p67 = scmp.lt.s32.totalorder %s66, 1
  %s68 = scalar_select %p67, %s66, 1
  %s69 = smul.addr %s68, 8
  %s70 = scalar_lea.vmem %s1, %s69
  %s71 = sadd.s32 0, 0
  %p72 = scmp.lt.s32.totalorder %s71, 0
  %s73 = scalar_select %p72, %s71, 0
  %s74 = smul.u32 2, %s73
  %p75 = scmp.eq.s32.totalorder 0, 0
  // Predicated region
  $region10: #{weighted_bce_dice_loss.1} parent=0 // pred_check
    %p76 = pneg %p75
  $region11: #{weighted_bce_dice_loss.1} parent=0 // pred_check_branch
    %78 = sbr.rel (%p76) target = $region13
  $region12: #{weighted_bce_dice_loss.1} parent=0 // pred_region
    %79 = vst [vmem:[%s2] sm:$0xff] 0.0
  $region13: #{weighted_bce_dice_loss.1} parent=0 // pred_fallthru
    _
  %s80 = sadd.s32 0, 0
  %s81 = smul.u32 %s80, 2048
  %s82 = sadd.s32 %s81, 2048
  %p83 = scmp.le.s32.totalorder %s82, 2048
  // Predicated region
  $region14: #{weighted_bce_dice_loss.1} parent=0 // pred_check
    %p84 = pneg %p83
  $region15: #{weighted_bce_dice_loss.1} parent=0 // pred_check_branch
    %86 = sbr.rel (%p84) target = $region17
  $region16: #{weighted_bce_dice_loss.1} parent=0 // pred_region
    %v87 = vld [vmem:[%s58] sm:$0xff]
    %v88 = vld [vmem:[%s58 + $0x8] sm:$0xff]
    %v89 = vld [vmem:[%s70] sm:$0xff]
    %v90 = vld [vmem:[%s70 + $0x8] sm:$0xff]
    %v91 = vmax.f32 %v87, 1e-07
    %v92 = vmax.f32 %v88, 1e-07
    %v93 = vmin.f32 %v91, 0.9999999
    %v94 = vmin.f32 %v92, 0.9999999
    %v95 = vlog2.pop %v93
    %v96 = vmul.f32 %v95, 0.6931472
    %v97 = vlog2.pop %v94
    %v98 = vmul.f32 %v97, 0.6931472
    %v99 = vsub.f32 1.0, %v93
    %v100 = vsub.f32 1.0, %v94
    %v101 = vlog2.pop %v99
    %v102 = vmul.f32 %v101, 0.6931472
    %v103 = vlog2.pop %v100
    %v104 = vmul.f32 %v103, 0.6931472
    %v105 = vsub.f32 %v96, %v102
    %v106 = vsub.f32 %v98, %v104
    %v107 = vmul.f32 %v89, %v105
    %v108 = vmul.f32 %v90, %v106
    %v109 = vadd.f32 %v107, %v102
    %v110 = vadd.f32 %v108, %v104
    %v111 = vmul.f32 %v93, %v89
    %v112 = vmul.f32 %v94, %v90
    %v113 = vadd.f32 %v93, %v89
    %v114 = vadd.f32 %v94, %v90
    %v115 = vadd.f32 %v109, %v110
    %v116 = vrot.slane %v115, 4
    %v117 = vadd.f32 %v115, %v116
    %v118 = vrot.slane %v117, 2
    %v119 = vadd.f32 %v117, %v118
    %v120 = vrot.slane %v119, 1
    %v121 = vadd.f32 %v119, %v120
    %v122 = vadd.f32 %v111, %v112
    %v123 = vrot.slane %v122, 4
    %v124 = vadd.f32 %v122, %v123
    %v125 = vrot.slane %v124, 2
    %v126 = vadd.f32 %v124, %v125
    %v127 = vrot.slane %v126, 1
    %v128 = vadd.f32 %v126, %v127
    %v129 = vadd.f32 %v113, %v114
    %v130 = vrot.slane %v129, 4
    %v131 = vadd.f32 %v129, %v130
    %v132 = vrot.slane %v131, 2
    %v133 = vadd.f32 %v131, %v132
    %v134 = vrot.slane %v133, 1
    %v135 = vadd.f32 %v133, %v134
    %vm136 = vcmask 1040384
    %v137 = vsel %vm136, %v121, %v128
    %vm138 = vcmask 1041408
    %v139 = vsel %vm138, %v137, %v135
    %vm140 = vcmask 1042432
    %v141 = vsel %vm140, %v139, 0.0
    %v142 = vld [vmem:[%s2] sm:$0xff]
    %v143 = vadd.f32 %v142, %v141
    %144 = vst [vmem:[%s2] sm:$0xff] %v143
  $region17: #{weighted_bce_dice_loss.1} parent=0 // pred_fallthru
    _
  %p145 = scmp.gt.s32.totalorder %s82, 2048
  // Predicated region
  $region18: #{weighted_bce_dice_loss.1} parent=0 // pred_check
    %p146 = pneg %p145
  $region19: #{weighted_bce_dice_loss.1} parent=0 // pred_check_branch
    %148 = sbr.rel (%p146) target = $region21
  $region20: #{weighted_bce_dice_loss.1} parent=0 // pred_region
    %v149 = vlaneseq
    %v150 = vshrl.u32 %v149, 7
    %v151 = vadd.s32 %v150, 8
    %v152 = vlaneseq
    %v153 = vand.u32 %v152, 127
    %v154 = vmul.u32 %v150, 128
    %v155 = vmul.u32 %v151, 128
    %v156 = vstv %s81
    %v157 = vadd.s32 %v156, %v154
    %v158 = vadd.s32 %v156, %v155
    %v159 = vadd.s32 %v157, %v153
    %v160 = vadd.s32 %v158, %v153
    %v161 = vld [vmem:[%s58] sm:$0xff]
    %v162 = vld [vmem:[%s58 + $0x8] sm:$0xff]
    %v163 = vld [vmem:[%s70] sm:$0xff]
    %v164 = vld [vmem:[%s70 + $0x8] sm:$0xff]
    %vm165 = vcmp.lt.s32.totalorder %v159, 2048
    %vm166 = vcmp.lt.s32.totalorder %v160, 2048
    %v167 = vsel %vm165, %v161, 0.5
    %v168 = vsel %vm166, %v162, 0.5
    %v169 = vsel %vm165, %v163, 0.0
    %v170 = vsel %vm166, %v164, 0.0
    %v171 = vmax.f32 %v167, 1e-07
    %v172 = vmax.f32 %v168, 1e-07
    %v173 = vmin.f32 %v171, 0.9999999
    %v174 = vmin.f32 %v172, 0.9999999
    %v175 = vlog2.pop %v173
    %v176 = vmul.f32 %v175, 0.6931472
    %v177 = vlog2.pop %v174
    %v178 = vmul.f32 %v177, 0.6931472
    %v179 = vsub.f32 1.0, %v173
    %v180 = vsub.f32 1.0, %v174
    %v181 = vlog2.pop %v179
    %v182 = vmul.f32 %v181, 0.6931472
    %v183 = vlog2.pop %v180
    %v184 = vmul.f32 %v183, 0.6931472
    %v185 = vsub.f32 %v176, %v182
    %v186 = vsub.f32 %v178, %v184
    %v187 = vmul.f32 %v169, %v185
    %v188 = vmul.f32 %v170, %v186
    %v189 = vadd.f32 %v187, %v182
    %v190 = vadd.f32 %v188, %v184
    %v191 = vmul.f32 %v173, %v169
    %v192 = vmul.f32 %v174, %v170
    %v193 = vsel %vm165, 1, 0
    %v194 = vsel %vm166, 1, 0
    %v195 = vcvt.s32.f32 %v193
    %v196 = vcvt.s32.f32 %v194
    %v197 = vmul.f32 %v189, %v195
    %v198 = vmul.f32 %v190, %v196
    %v199 = vmul.f32 %v173, %v195
    %v200 = vmul.f32 %v174, %v196
    %v201 = vadd.f32 %v199, %v169
    %v202 = vadd.f32 %v200, %v170
    %v203 = vadd.f32 %v197, %v198
    %v204 = vrot.slane %v203, 4
    %v205 = vadd.f32 %v203, %v204
    %v206 = vrot.slane %v205, 2
    %v207 = vadd.f32 %v205, %v206
    %v208 = vrot.slane %v207, 1
    %v209 = vadd.f32 %v207, %v208
    %v210 = vadd.f32 %v191, %v192
    %v211 = vrot.slane %v210, 4
    %v212 = vadd.f32 %v210, %v211
    %v213 = vrot.slane %v212, 2
    %v214 = vadd.f32 %v212, %v213
    %v215 = vrot.slane %v214, 1
    %v216 = vadd.f32 %v214, %v215
    %v217 = vadd.f32 %v201, %v202
    %v218 = vrot.slane %v217, 4
    %v219 = vadd.f32 %v217, %v218
    %v220 = vrot.slane %v219, 2
    %v221 = vadd.f32 %v219, %v220
    %v222 = vrot.slane %v221, 1
    %v223 = vadd.f32 %v221, %v222
    %vm224 = vcmask 1040384
    %v225 = vsel %vm224, %v209, %v216
    %vm226 = vcmask 1041408
    %v227 = vsel %vm226, %v225, %v223
    %vm228 = vcmask 1042432
    %v229 = vsel %vm228, %v227, 0.0
    %v230 = vld [vmem:[%s2] sm:$0xff]
    %v231 = vadd.f32 %v230, %v229
    %232 = vst [vmem:[%s2] sm:$0xff] %v231
  $region21: #{weighted_bce_dice_loss.1} parent=0 // pred_fallthru
    _
  // Predicated region
  $region22: #{weighted_bce_dice_loss.1} parent=0 // pred_check
    _
  $region23: #{weighted_bce_dice_loss.1} parent=0 // pred_check_branch
    %234 = sbr.rel (0) target = $region25
  $region24: #{weighted_bce_dice_loss.1} parent=0 // pred_region
    _
  $region25: #{weighted_bce_dice_loss.1} parent=0 // pred_fallthru
    _
  // Predicated region
  $region26: #{weighted_bce_dice_loss.1} parent=0 // pred_check
    _
  $region27: #{weighted_bce_dice_loss.1} parent=0 // pred_check_branch
    %236 = sbr.rel (0) target = $region29
  $region28: #{weighted_bce_dice_loss.1} parent=0 // pred_region
    _
  $region29: #{weighted_bce_dice_loss.1} parent=0 // pred_fallthru
    _

</llo_original>
